<compile_context>
chip_gen: v6e
topology: v6e:2x2x1
jax: 0.10.0
libtpu: 0.0.40
codegen_flags: <defaults>
</compile_context>

<pallas_src>
import functools

import jax
import jax.numpy as jnp
from jax import lax
from jax.experimental import pallas as pl
from jax.experimental.pallas import tpu as pltpu


def _soft_prefix_max_kernel(x_ref, o_ref, tril_ref, m_ref, s_ref, *,
                            dims, lane_block, seq_len, block_t, chunk,
                            n_chunks, mask_rows, blend_cols):
    """One (batch, lane-block, seq-block) grid step of the online scan.

    x_ref / o_ref : (1, block_t, lane_block) VMEM tiles (HBM buffer is aliased).
    tril_ref      : (chunk, chunk) f32 lower-triangular ones (MXU prefix LHS).
    m_ref / s_ref : (1, lane_block) f32 running (max, sum) carry across T blocks.
    """
    t_idx = pl.program_id(2)
    lb = lane_block

    # Reset the carry and (re)build the triangular MXU operand at the start of
    # every (batch, lane-block) sequence scan.  Cheap: once per T sweep.
    @pl.when(t_idx == 0)
    def _init():
        r = lax.broadcasted_iota(jnp.int32, (chunk, chunk), 0)
        c = lax.broadcasted_iota(jnp.int32, (chunk, chunk), 1)
        tril_ref[...] = (c <= r).astype(jnp.float32)
        m_ref[...] = jnp.full(m_ref.shape, -jnp.inf, dtype=jnp.float32)
        s_ref[...] = jnp.zeros(s_ref.shape, dtype=jnp.float32)

    if blend_cols:
        # Hoisted (1, lb) lane mask: which lanes of this feature block are part
        # of the scanned slab (global column < dims); the rest pass through.
        col = pl.program_id(1) * lb + lax.broadcasted_iota(jnp.int32, (1, lb), 1)
        col_mask = col < dims

    def chunk_body(c, carry):
        m_run, s_run = carry
        r0 = c * chunk
        if not isinstance(r0, int):
            r0 = pl.multiple_of(r0, chunk)

        z = x_ref[0, pl.ds(r0, chunk), :].astype(jnp.float32) * 5.0
        if mask_rows:
            # Only compiled when T % block_t != 0: padded rows -> -inf so they
            # contribute exp() = 0 and cannot raise the running max.
            valid = seq_len - (t_idx * block_t + r0)
            row = lax.broadcasted_iota(jnp.int32, (chunk, lb), 0)
            z = jnp.where(row < valid, z, -jnp.inf)

        m_new = jnp.maximum(m_run, jnp.max(z, axis=0, keepdims=True))   # (1, lb)
        e = jnp.exp(z - m_new)                                          # (chunk, lb)

        # Inclusive prefix sum over rows on the MXU: tril_ones @ e.
        # HIGHEST precision (multi-pass bf16) preserves f32 accuracy.
        prefix = jnp.dot(tril_ref[...], e,
                         preferred_element_type=jnp.float32,
                         precision=lax.Precision.HIGHEST)

        carry_s = s_run * jnp.exp(m_run - m_new)                        # (1, lb)
        scanned = (m_new + jnp.log(prefix + carry_s)) * 0.2             # lcse(5x)/5

        out_block = scanned.astype(o_ref.dtype)
        if blend_cols:
            out_block = jnp.where(col_mask, out_block,
                                  x_ref[0, pl.ds(r0, chunk), :])
        o_ref[0, pl.ds(r0, chunk), :] = out_block

        return m_new, carry_s + prefix[chunk - 1:chunk, :]

    m0 = m_ref[...]
    s0 = s_ref[...]
    if n_chunks == 1:
        m_fin, s_fin = chunk_body(0, (m0, s0))
    else:
        m_fin, s_fin = lax.fori_loop(0, n_chunks, chunk_body, (m0, s0))
    m_ref[...] = m_fin
    s_ref[...] = s_fin


def soft_prefix_max(x, dimensions):
    """x: (B, T, D). Returns x with x[..., :dimensions] replaced by
    logcumsumexp(x[..., :dimensions] * 5, axis=1) / 5; other columns untouched.

    NOTE: the output aliases the input (input_output_aliases={0: 0}).  Call
    through jax.jit(..., donate_argnums=0) (as in __main__) so XLA does not
    insert a defensive full-array copy; x must not be reused afterwards
    (matching the PyTorch module's in-place mutation).
    """
    B, T, D = x.shape
    dims = int(min(dimensions, D))
    assert dims > 0

    # Lane (feature) tiling: only the scanned columns, rounded up to a
    # lane-dense multiple of 128 (clamped to D), are streamed; columns >= cb
    # never move (they stay in place in HBM through the output alias).
    if D <= 128:
        cb = D
    else:
        cb = min(((dims + 127) // 128) * 128, D)
    if cb % 128 == 0:
        lb, n_f = 128, cb // 128          # parallel feature-block axis (v7x)
    else:
        lb, n_f = cb, 1                   # cb == D, full-width block

    # Rows per MXU prefix-sum chunk.
    chunk = min(128, T)

    # Sequence tile: a multiple of `chunk`, large enough to amortize the
    # ~0.35 us per-grid-step overhead, capped so in+out double-buffering stays
    # <= 8 MiB (comfortable on v5e/v6e and within v7x's 32 MiB scoped VMEM).
    esize = jnp.dtype(x.dtype).itemsize
    if T <= chunk:
        tb = T
    else:
        tb = 2048
        while tb > chunk and 4 * tb * lb * esize > (8 << 20):
            tb //= 2
        tb = min(tb, ((T + chunk - 1) // chunk) * chunk)
    grid_t = pl.cdiv(T, tb)
    n_chunks = max(1, tb // chunk)
    mask_rows = (T % tb) != 0
    blend_cols = dims < cb

    kernel = functools.partial(
        _soft_prefix_max_kernel, dims=dims, lane_block=lb, seq_len=T,
        block_t=tb, chunk=chunk, n_chunks=n_chunks, mask_rows=mask_rows,
        blend_cols=blend_cols)

    cost = pl.CostEstimate(
        flops=int(B * T * cb * (2 * chunk + 12)),      # MXU prefix dominates
        transcendentals=int(3 * B * T * cb),           # exp, exp(carry), log
        bytes_accessed=int(2 * B * T * cb * esize))    # scanned slab r+w only

    return pl.pallas_call(
        kernel,
        out_shape=jax.ShapeDtypeStruct((B, T, D), x.dtype),
        grid_spec=pltpu.PrefetchScalarGridSpec(
            num_scalar_prefetch=0,
            grid=(B, n_f, grid_t),
            in_specs=[pl.BlockSpec((1, tb, lb), lambda b, f, t: (b, t, f))],
            out_specs=pl.BlockSpec((1, tb, lb), lambda b, f, t: (b, t, f)),
            scratch_shapes=[
                pltpu.VMEM((chunk, chunk), jnp.float32),  # tril ones (MXU LHS)
                pltpu.VMEM((1, lb), jnp.float32),         # running max  m
                pltpu.VMEM((1, lb), jnp.float32),         # running sum  s
            ],
        ),
        # Output aliases the input: feature columns >= cb are never DMA'd or
        # rewritten by the kernel -- they simply stay in place in HBM.
        input_output_aliases={0: 0},
        compiler_params=pltpu.CompilerParams(
            dimension_semantics=("parallel", "parallel", "arbitrary")),
        cost_estimate=cost,
    )(x)


def _reference_soft_prefix_max(x, dims):
    part = x[..., :dims] * 5.0
    run = part[:, 0, :]
    outs = [run]
    for t in range(1, x.shape[1]):
        run = jnp.logaddexp(run, part[:, t, :])
        outs.append(run)
    scanned = jnp.stack(outs, axis=1) / 5.0
    return jnp.concatenate([scanned.astype(x.dtype), x[..., dims:]], axis=-1)


if __name__ == "__main__":
    key = jax.random.PRNGKey(0)

    # Donated, statically-specialized entry point (avoids the defensive copy
    # that input_output_aliases would otherwise trigger).
    run = jax.jit(soft_prefix_max, static_argnums=(1,), donate_argnums=(0,))

    # --- Case 1: module-sized example (SoftPrefixMax(dimensions=16)). -------
    B, T, D = 2, 8, 32
    dimensions = 16
    k1, k2 = jax.random.split(key)
    x = jax.random.normal(k1, (B, T, D), dtype=jnp.float32)

    ref = jax.block_until_ready(_reference_soft_prefix_max(x, dimensions))
    out = jax.block_until_ready(run(x, dimensions))
    assert out.shape == (B, T, D) and out.dtype == jnp.float32
    assert jnp.allclose(out, ref, atol=1e-5, rtol=1e-5), "case 1 mismatch"

    # --- Case 2: exercises fori chunks, padded last rows, 2 feature blocks,
    #             passthrough-lane blend, untouched trailing columns. --------
    B2, T2, D2, dims2 = 2, 160, 384, 200
    x2 = jax.random.normal(k2, (B2, T2, D2), dtype=jnp.float32)

    ref2 = jax.block_until_ready(_reference_soft_prefix_max(x2, dims2))
    out2 = jax.block_until_ready(run(x2, dims2))
    assert out2.shape == (B2, T2, D2) and out2.dtype == jnp.float32
    assert jnp.allclose(out2, ref2, atol=1e-5, rtol=1e-5), "case 2 mismatch"

    print("KERNEL_OK")
</pallas_src>

<mosaic_0001>
module attributes {stable_mosaic.version = 11 : i64} {
  func.func @_soft_prefix_max_kernel(%arg0: i32, %arg1: i32, %arg2: i32, %arg3: memref<1x8x32xf32, #tpu.memory_space<vmem>>, %arg4: memref<1x8x32xf32, #tpu.memory_space<vmem>>, %arg5: memref<8x8xf32, #tpu.memory_space<vmem>>, %arg6: memref<1x32xf32, #tpu.memory_space<vmem>>, %arg7: memref<1x32xf32, #tpu.memory_space<vmem>>) attributes {dimension_semantics = [#tpu.dimension_semantics<parallel>, #tpu.dimension_semantics<parallel>, #tpu.dimension_semantics<arbitrary>], iteration_bounds = array<i64: 2, 1, 1>, scalar_prefetch = 0 : i64, scratch_operands = 3 : i64, tpu.core_type = #tpu.core_type<tc>, window_params = [{transform_indices = @transform_0, window_bounds = array<i64: 1, 8, 32>}, {transform_indices = @transform_1, window_bounds = array<i64: 1, 8, 32>}]} {
    %c0_i32 = arith.constant 0 : i32
    %0 = arith.cmpi eq, %arg2, %c0_i32 : i32
    %1 = arith.extui %0 : i1 to i32
    %c0_i32_0 = arith.constant 0 : i32
    %2 = arith.cmpi ne, %1, %c0_i32_0 : i32
    scf.if %2 {
      %45 = tpu.iota {dimensions = array<i32: 0>} : vector<8x8xi32>
      %46 = tpu.iota {dimensions = array<i32: 1>} : vector<8x8xi32>
      %47 = arith.cmpi sle, %46, %45 : vector<8x8xi32>
      %48 = arith.extui %47 : vector<8x8xi1> to vector<8x8xi32>
      %49 = arith.sitofp %48 : vector<8x8xi32> to vector<8x8xf32>
      %c0_22 = arith.constant 0 : index
      %c0_23 = arith.constant 0 : index
      %50 = vector.load %arg5[%c0_22, %c0_23] : memref<8x8xf32, #tpu.memory_space<vmem>>, vector<8x8xf32>
      tpu.vector_store %arg5[%c0_22, %c0_23], %49 {strides = array<i32>} : memref<8x8xf32, #tpu.memory_space<vmem>>, vector<8x8xf32>,
      %cst_24 = arith.constant 0xFF800000 : f32
      %51 = vector.broadcast %cst_24 : f32 to vector<1x32xf32>
      %c0_25 = arith.constant 0 : index
      %c0_26 = arith.constant 0 : index
      %52 = vector.load %arg6[%c0_25, %c0_26] : memref<1x32xf32, #tpu.memory_space<vmem>>, vector<1x32xf32>
      tpu.vector_store %arg6[%c0_25, %c0_26], %51 {strides = array<i32>} : memref<1x32xf32, #tpu.memory_space<vmem>>, vector<1x32xf32>,
      %cst_27 = arith.constant 0.000000e+00 : f32
      %53 = vector.broadcast %cst_27 : f32 to vector<1x32xf32>
      %c0_28 = arith.constant 0 : index
      %c0_29 = arith.constant 0 : index
      %54 = vector.load %arg7[%c0_28, %c0_29] : memref<1x32xf32, #tpu.memory_space<vmem>>, vector<1x32xf32>
      tpu.vector_store %arg7[%c0_28, %c0_29], %53 {strides = array<i32>} : memref<1x32xf32, #tpu.memory_space<vmem>>, vector<1x32xf32>,
    } else {
    }
    %c32_i32 = arith.constant 32 : i32
    %3 = arith.muli %arg1, %c32_i32 : i32
    %4 = tpu.iota {dimensions = array<i32: 1>} : vector<1x32xi32>
    %5 = vector.broadcast %3 : i32 to vector<1x32xi32>
    %6 = arith.addi %5, %4 : vector<1x32xi32>
    %c16_i32 = arith.constant 16 : i32
    %7 = vector.broadcast %c16_i32 : i32 to vector<1x32xi32>
    %8 = arith.cmpi slt, %6, %7 : vector<1x32xi32>
    %c0 = arith.constant 0 : index
    %c0_1 = arith.constant 0 : index
    %9 = vector.load %arg6[%c0, %c0_1] : memref<1x32xf32, #tpu.memory_space<vmem>>, vector<1x32xf32>
    %c0_2 = arith.constant 0 : index
    %c0_3 = arith.constant 0 : index
    %10 = vector.load %arg7[%c0_2, %c0_3] : memref<1x32xf32, #tpu.memory_space<vmem>>, vector<1x32xf32>
    %c0_4 = arith.constant 0 : index
    %c0_5 = arith.constant 0 : index
    %c0_6 = arith.constant 0 : index
    %11 = vector.load %arg3[%c0_4, %c0_5, %c0_6] : memref<1x8x32xf32, #tpu.memory_space<vmem>>, vector<1x8x32xf32>
    %12 = vector.shape_cast %11 : vector<1x8x32xf32> to vector<8x32xf32>
    %cst = arith.constant 5.000000e+00 : f32
    %13 = vector.broadcast %cst : f32 to vector<8x32xf32>
    %14 = arith.mulf %12, %13 : vector<8x32xf32>
    %cst_7 = arith.constant dense<0xFF800000> : vector<32xf32>
    %15 = vector.multi_reduction <maximumf>, %14, %cst_7 [0] : vector<8x32xf32> to vector<32xf32>
    %16 = vector.shape_cast %15 : vector<32xf32> to vector<1x32xf32>
    %17 = arith.maximumf %9, %16 : vector<1x32xf32>
    %18 = vector.broadcast %17 : vector<1x32xf32> to vector<8x32xf32>
    %19 = arith.subf %14, %18 : vector<8x32xf32>
    %20 = math.exp %19 : vector<8x32xf32>
    %c0_8 = arith.constant 0 : index
    %c0_9 = arith.constant 0 : index
    %21 = vector.load %arg5[%c0_8, %c0_9] : memref<8x8xf32, #tpu.memory_space<vmem>>, vector<8x8xf32>
    %cst_10 = arith.constant dense<0.000000e+00> : vector<8x32xf32>
    %22 = tpu.matmul %21, %20, %cst_10 {dimension_numbers = #tpu.dot_dimension_numbers<[1], [0], [0], [1], [0, 0, 1, 1], [], []>, precision = #tpu.contract_precision<fp32>} : vector<8x8xf32>, vector<8x32xf32>, vector<8x32xf32> -> vector<8x32xf32>
    %23 = arith.subf %9, %17 : vector<1x32xf32>
    %24 = math.exp %23 : vector<1x32xf32>
    %25 = arith.mulf %10, %24 : vector<1x32xf32>
    %26 = vector.broadcast %25 : vector<1x32xf32> to vector<8x32xf32>
    %27 = arith.addf %22, %26 : vector<8x32xf32>
    %28 = math.log %27 : vector<8x32xf32>
    %29 = vector.broadcast %17 : vector<1x32xf32> to vector<8x32xf32>
    %30 = arith.addf %29, %28 : vector<8x32xf32>
    %cst_11 = arith.constant 2.000000e-01 : f32
    %31 = vector.broadcast %cst_11 : f32 to vector<8x32xf32>
    %32 = arith.mulf %30, %31 : vector<8x32xf32>
    %c0_12 = arith.constant 0 : index
    %c0_13 = arith.constant 0 : index
    %c0_14 = arith.constant 0 : index
    %33 = vector.load %arg3[%c0_12, %c0_13, %c0_14] : memref<1x8x32xf32, #tpu.memory_space<vmem>>, vector<1x8x32xf32>
    %34 = vector.shape_cast %33 : vector<1x8x32xf32> to vector<8x32xf32>
    %35 = vector.shape_cast %8 : vector<1x32xi1> to vector<1x32xi1>
    %36 = vector.broadcast %35 : vector<1x32xi1> to vector<8x32xi1>
    %37 = arith.select %36, %32, %34 : vector<8x32xi1>, vector<8x32xf32>
    %c0_15 = arith.constant 0 : index
    %c0_16 = arith.constant 0 : index
    %c0_17 = arith.constant 0 : index
    %38 = vector.load %arg4[%c0_15, %c0_16, %c0_17] : memref<1x8x32xf32, #tpu.memory_space<vmem>>, vector<1x8x32xf32>
    %39 = vector.shape_cast %38 : vector<1x8x32xf32> to vector<8x32xf32>
    %40 = vector.shape_cast %37 : vector<8x32xf32> to vector<1x8x32xf32>
    tpu.vector_store %arg4[%c0_15, %c0_16, %c0_17], %40 {strides = array<i32>} : memref<1x8x32xf32, #tpu.memory_space<vmem>>, vector<1x8x32xf32>,
    %41 = vector.extract_strided_slice %22 {offsets = [7, 0], sizes = [1, 32], strides = [1, 1]} : vector<8x32xf32> to vector<1x32xf32>
    %42 = arith.addf %25, %41 : vector<1x32xf32>
    %c0_18 = arith.constant 0 : index
    %c0_19 = arith.constant 0 : index
    %43 = vector.load %arg6[%c0_18, %c0_19] : memref<1x32xf32, #tpu.memory_space<vmem>>, vector<1x32xf32>
    tpu.vector_store %arg6[%c0_18, %c0_19], %17 {strides = array<i32>} : memref<1x32xf32, #tpu.memory_space<vmem>>, vector<1x32xf32>,
    %c0_20 = arith.constant 0 : index
    %c0_21 = arith.constant 0 : index
    %44 = vector.load %arg7[%c0_20, %c0_21] : memref<1x32xf32, #tpu.memory_space<vmem>>, vector<1x32xf32>
    tpu.vector_store %arg7[%c0_20, %c0_21], %42 {strides = array<i32>} : memref<1x32xf32, #tpu.memory_space<vmem>>, vector<1x32xf32>,
    return
  }
  func.func @transform_0(%arg0: i32, %arg1: i32, %arg2: i32) -> (i32, i32, i32) {
    %c0_i32 = arith.constant 0 : i32
    return %arg0, %arg2, %arg1 : i32, i32, i32
  }
  func.func @transform_1(%arg0: i32, %arg1: i32, %arg2: i32) -> (i32, i32, i32) {
    %c0_i32 = arith.constant 0 : i32
    return %arg0, %arg2, %arg1 : i32, i32, i32
  }
}

</mosaic_0001>

<llo_original>
// kernel: soft_prefix_max.1
$region0: #{soft_prefix_max.1}
  #allocation0 [shape = 'u32[]', space=smem, size = 0x4, offset = 0x4, fixed_abs, tag = 'smem constant byte address 0x4 - core index']
  #allocation1 [shape = 'u32[144,128]{1,0:T(1,128)}', space=vmem, size = 0x12000, scoped, tag = 'internal scratch']
  #allocation2 [shape = 'f32[8,8]{1,0:T(8,128)}', space=vmem, size = 0x1000, scoped, tag = 'scratch operand']
  #allocation3 [shape = 'f32[1,32]{1,0:T(1,128)}', space=vmem, size = 0x200, scoped, tag = 'scratch operand']
  #allocation4 [shape = 'f32[1,32]{1,0:T(1,128)}', space=vmem, size = 0x200, scoped, tag = 'scratch operand']
  %s0 = inlined_call_operand.hbm [shape: f32[2,8,32], index: 0, kind: input, shape index: {}, may-alias: {0,1}]
  %s1 = inlined_call_operand.hbm [shape: f32[2,8,32], index: 1, kind: output, shape index: {}, may-alias: {0,1}]
  %s2 = sld [smem:[#allocation0]]
  $region45: #{soft_prefix_max.1} parent=0
    _
  %s4 = ssub.s32 1, %s2
  %s5 = scalar_select 0, %s4, %s2
  $region1: #{soft_prefix_max.1} parent=0
    #allocation5 [shape = 'u8[8192]{0}', space=vmem, size = 0x2000, scoped, tag = 'input window, operand 0']
    #allocation6 [shape = 's32[2]{0}', space=sflag, size = 0x8, scoped, tag = 'scoped memory for soft_prefix_max.1']
    #allocation7 [shape = 's32[2]{0}', space=sflag, size = 0x8, scoped, tag = 'scoped memory for soft_prefix_max.1']
    #allocation8 [shape = 'u8[8192]{0}', space=vmem, size = 0x2000, scoped, tag = 'output window, operand 0']
    %6 = vsyncpa [#allocation6], 0
    %s7 = scalar_lea.sflag [#allocation6], 1
    %8 = vsyncpa %s7, 0
    %9 = vsyncpa [#allocation7], 0
    %s10 = scalar_lea.sflag [#allocation7], 1
    %11 = vsyncpa %s10, 0
    loop: start=0, step=1, limit=4
    $region2: #{soft_prefix_max.1} parent=1 // loop_pre_header
      _
    $region3: #{soft_prefix_max.1} parent=1 // loop_header
      %s13 = sphi 0, %s17
      %p14 = scmp.ge.s32.totalorder %s13, 4
      %s20 = sphi 0, %s39
      %s21 = sphi 0, %s35
      %s22 = sphi 0, %s31
      %s23 = sphi 0, %s20
      %s24 = sphi 0, %s21
      %s25 = sphi 0, %s22
      %s26 = sphi 0, %s23
      %s27 = sphi 0, %s24
      %s28 = sphi 0, %s25
      %s46 = sphi 0, %s48
      %s49 = sphi 0, %s46
      %s50 = sphi 0, %s49
      %s66 = sphi 0, %s50
      %s76 = sphi 0, %s78
      %s79 = sphi 0, %s76
      %s80 = sphi 0, %s79
      %s96 = sphi 0, %s80
    $region4: #{soft_prefix_max.1} parent=1 // loop_header_branch
      %16 = sbr.rel (%p14) target = $region8
    $region5: #{soft_prefix_max.1} parent=1 // loop_body
      %s18 = ssub.s32 %s13, 1
      %s19 = ssub.s32 %s13, 2
      %s29 = sadd.s32 1, %s22
      %p30 = scmp.ge.s32.totalorder %s29, 1
      %s31 = scalar_select %p30, 0, %s29
      %s32 = sadd.s32 1, %s21
      %s33 = scalar_select %p30, %s32, %s21
      %p34 = scmp.ge.s32.totalorder %s33, 1
      %s35 = scalar_select %p34, 0, %s33
      %s36 = sadd.s32 1, %s20
      %s37 = scalar_select %p34, %s36, %s20
      %p38 = scmp.ge.s32.totalorder %s37, 2
      %s39 = scalar_select %p38, 0, %s37
      %s40 = ssub.s32 %s20, %s39
      %s41 = ssub.s32 %s22, %s31
      %s42 = sor.u32 %s40, %s41
      %s43 = ssub.s32 %s21, %s35
      %s44 = sor.u32 %s42, %s43
      %p45 = scmp.eq.s32.totalorder %s44, 0
      %s47 = sadd.s32 %s46, 1
      %s48 = scalar_select %p45, %s46, %s47
      %p51 = pneg %p45
      %p52 = scmp.eq.s32.totalorder %s13, 1
      %p53 = por %p51, %p52
      %p54 = scmp.ne.s32.totalorder %s46, %s49
      %p55 = scmp.eq.s32.totalorder %s13, 0
      %p56 = por %p54, %p55
      %p57 = scmp.ne.s32.totalorder %s46, %s49
      %p58 = scmp.eq.s32.totalorder %s18, 1
      %p59 = por %p57, %p58
      %p60 = scmp.ne.s32.totalorder %s49, %s50
      %p61 = scmp.eq.s32.totalorder %s18, 0
      %p62 = por %p60, %p61
      %p63 = scmp.ne.s32.totalorder %s49, %s50
      %p64 = scmp.eq.s32.totalorder %s19, 1
      %p65 = por %p63, %p64
      %p67 = scmp.ne.s32.totalorder %s50, %s66
      %p68 = scmp.eq.s32.totalorder %s19, 0
      %p69 = por %p67, %p68
      %s70 = ssub.s32 %s20, %s39
      %s71 = ssub.s32 %s22, %s31
      %s72 = sor.u32 %s70, %s71
      %s73 = ssub.s32 %s21, %s35
      %s74 = sor.u32 %s72, %s73
      %p75 = scmp.eq.s32.totalorder %s74, 0
      %s77 = sadd.s32 %s76, 1
      %s78 = scalar_select %p75, %s76, %s77
      %p81 = pneg %p75
      %p82 = scmp.eq.s32.totalorder %s13, 1
      %p83 = por %p81, %p82
      %p84 = scmp.ne.s32.totalorder %s76, %s79
      %p85 = scmp.eq.s32.totalorder %s13, 0
      %p86 = por %p84, %p85
      %p87 = scmp.ne.s32.totalorder %s76, %s79
      %p88 = scmp.eq.s32.totalorder %s18, 1
      %p89 = por %p87, %p88
      %p90 = scmp.ne.s32.totalorder %s79, %s80
      %p91 = scmp.eq.s32.totalorder %s18, 0
      %p92 = por %p90, %p91
      %p93 = scmp.ne.s32.totalorder %s79, %s80
      %p94 = scmp.eq.s32.totalorder %s19, 1
      %p95 = por %p93, %p94
      %p97 = scmp.ne.s32.totalorder %s80, %s96
      %p98 = scmp.eq.s32.totalorder %s19, 0
      %p99 = por %p97, %p98
      %p100 = scmp.le.s32.totalorder 1, %s13
      %p101 = scmp.lt.s32.totalorder %s13, 3
      %p102 = pnand %p100, %p101
      %p103 = pneg %p102
      // Predicated region
      $region9: #{soft_prefix_max.1} parent=5 // pred_check
        _
      $region10: #{soft_prefix_max.1} parent=5 // pred_check_branch
        %105 = sbr.rel (%p102) target = $region12
      $region11: #{soft_prefix_max.1} parent=5 // pred_region
        %s106 = ssub.s32 %s13, 1
      $region12: #{soft_prefix_max.1} parent=5 // pred_fallthru
        _
      %p107 = scmp.lt.s32.totalorder %s13, 2
      // Predicated region
      $region13: #{soft_prefix_max.1} parent=5 // pred_check
        %p108 = pneg %p107
      $region14: #{soft_prefix_max.1} parent=5 // pred_check_branch
        %110 = sbr.rel (%p108) target = $region16
      $region15: #{soft_prefix_max.1} parent=5 // pred_region
        // Predicated region
        $region17: #{soft_prefix_max.1} parent=15 // pred_check
          %p111 = pneg %p56
        $region18: #{soft_prefix_max.1} parent=15 // pred_check_branch
          %113 = sbr.rel (%p111) target = $region20
        $region19: #{soft_prefix_max.1} parent=15 // pred_region
          %s114 = sand.u32 %s46, 1
          %s115 = scalar_lea.sflag [#allocation6], %s114
          %s116 = sand.u32 %s46, 1
          %s117 = smul.addr %s116, 8
          %s118 = scalar_lea.vmem [#allocation5], %s117
          %s120 = ssub.s32 128, 128
          %121 = vsyncadd %s115, %s120
          %s122 = sadd.s32 %s21, %s22
          %s123 = sadd.s32 %s122, %s20
          %s124 = smul.addr %s123, 128
          %s125 = scalar_lea.hbm %s0, %s124
          %s127 = sshll.u32 %s118, 4
          %s128 = int_to_ptr.vmem [resolvable:$true] %s127
          %130 = dma.hbm_to_vmem [thread:$0]  %s125, 128, %s128, %s115
        $region20: #{soft_prefix_max.1} parent=15 // pred_fallthru
          _
      $region16: #{soft_prefix_max.1} parent=5 // pred_fallthru
        _
      %p131 = scmp.le.s32.totalorder 1, %s13
      %p132 = scmp.lt.s32.totalorder %s13, 3
      %p133 = pnand %p131, %p132
      %p134 = pneg %p133
      // Predicated region
      $region21: #{soft_prefix_max.1} parent=5 // pred_check
        _
      $region22: #{soft_prefix_max.1} parent=5 // pred_check_branch
        %136 = sbr.rel (%p133) target = $region24
      $region23: #{soft_prefix_max.1} parent=5 // pred_region
        %s137 = ssub.s32 %s13, 1
        %s138 = sand.u32 %s49, 1
        %s139 = scalar_lea.sflag [#allocation6], %s138
        %s140 = sand.u32 %s49, 1
        %s141 = smul.addr %s140, 8
        %s142 = scalar_lea.vmem [#allocation5], %s141
        // Predicated region
        $region25: #{soft_prefix_max.1} parent=23 // pred_check
          %p143 = pneg %p62
        $region26: #{soft_prefix_max.1} parent=23 // pred_check_branch
          %145 = sbr.rel (%p143) target = $region28
        $region27: #{soft_prefix_max.1} parent=23 // pred_region
          %146 = dma.done %s139, 128
        $region28: #{soft_prefix_max.1} parent=23 // pred_fallthru
          _
        %s147 = sand.u32 %s49, 1
        %s148 = scalar_lea.sflag [#allocation6], %s147
        %s149 = sand.u32 %s49, 1
        %s150 = smul.addr %s149, 8
        %s151 = scalar_lea.vmem [#allocation5], %s150
        %p152 = pneg %p62
        %p153 = pneg %p59
        %p154 = pneg %p92
        %p155 = pneg %p89
        %s156 = sand.u32 %s79, 1
        %s157 = scalar_lea.sflag [#allocation7], %s156
        %s158 = sand.u32 %s79, 1
        %s159 = smul.addr %s158, 8
        %s160 = scalar_lea.vmem [#allocation8], %s159
        %p161 = scmp.eq.s32.totalorder %s25, 0
        // Predicated region
        $region29: #{soft_prefix_max.1} parent=23 // pred_check
          %p162 = pneg %p161
        $region30: #{soft_prefix_max.1} parent=23 // pred_check_branch
          %164 = sbr.rel (%p162) target = $region32
        $region31: #{soft_prefix_max.1} parent=23 // pred_region
          %v165 = vlaneseq
          %v166 = vshrl.u32 %v165, 7
          %v167 = vlaneseq
          %v168 = vand.u32 %v167, 127
          %vm169 = vcmp.le.s32.totalorder %v168, %v166
          %v170 = vsel %vm169, 1, 0
          %v171 = vcvt.s32.f32 %v170
          %vm172 = vcmask 64512
          %173 = vst.msk [vmem:[#allocation2] sm:$0xff] %vm172, %v171
          %vm174 = vcmask 253952
          %175 = vst.msk [vmem:[#allocation3] sm:$0x1] %vm174, -inf
          %176 = vst.msk [vmem:[#allocation4] sm:$0x1] %vm174, 0.0
        $region32: #{soft_prefix_max.1} parent=23 // pred_fallthru
          _
        %s177 = smul.u32 %s24, 32
        %v178 = vlaneseq
        %v179 = vand.u32 %v178, 127
        %v180 = vstv %s177
        %v181 = vadd.s32 %v180, %v179
        %vm182 = vcmp.lt.s32.totalorder %v181, 16
        %v183 = vld [vmem:[#allocation3] sm:$0x1]
        %v184 = vld [vmem:[#allocation4] sm:$0x1]
        %v185 = vld [vmem:[%s142] sm:$0xff]
        %v186 = vmul.f32 %v185, 5.0
        %vm187 = vcmask 261120
        %v188 = vsel %vm187, %v186, -inf
        %v189 = vrot.slane %v188, 4
        %v190 = vmax.f32 %v188, %v189
        %v191 = vrot.slane %v190, 2
        %v192 = vmax.f32 %v190, %v191
        %v193 = vrot.slane %v192, 1
        %v194 = vmax.f32 %v192, %v193
        %v195 = vmax.f32 %v183, %v194
        %v197 = vlaneseq
        %v198 = vshrl.u32 %v197, 7
        %v199 = vsub.s32 0, %v198
        %v200 = vrot.slane %v195, %v199
        %v202 = vsub.f32 %v186, %v200
        %v203 = vmul.f32 %v202, 1.442695
        %v204 = vpow.pop %v203
        %v205 = vld [vmem:[#allocation2] sm:$0xff]
        %vm206 = vcmask 64512
        %v208 = vsel %vm206, %v205, 0
        %210 = vmatprep.subr.mxu0 0.0
        %211 = vmatpush1.msra.mxu0 0.0
        %212 = vmatprep.subr.mxu0 0.0
        %213 = vmatpush1.msra.mxu0 0.0
        %214 = vmatprep.subr.mxu0 0.0
        %215 = vmatpush1.msra.mxu0 0.0
        %216 = vmatprep.subr.mxu0 0.0
        %217 = vmatpush1.msra.mxu0 0.0
        %218 = vmatprep.subr.mxu0 0.0
        %219 = vmatpush1.msra.mxu0 0.0
        %220 = vmatprep.subr.mxu0 0.0
        %221 = vmatpush1.msra.mxu0 0.0
        %222 = vmatprep.subr.mxu0 0.0
        %223 = vmatpush1.msra.mxu0 0.0
        %224 = vmatprep.subr.mxu0 0.0
        %225 = vmatpush1.msra.mxu0 0.0
        %226 = vmatprep.subr.mxu0 0.0
        %227 = vmatpush1.msra.mxu0 0.0
        %228 = vmatprep.subr.mxu0 0.0
        %229 = vmatpush1.msra.mxu0 0.0
        %230 = vmatprep.subr.mxu0 0.0
        %231 = vmatpush1.msra.mxu0 0.0
        %232 = vmatprep.subr.mxu0 0.0
        %233 = vmatpush1.msra.mxu0 0.0
        %234 = vmatprep.subr.mxu0 0.0
        %235 = vmatpush1.msra.mxu0 0.0
        %236 = vmatprep.subr.mxu0 0.0
        %237 = vmatpush1.msra.mxu0 0.0
        %238 = vmatprep.subr.mxu0 0.0
        %239 = vmatpush1.msra.mxu0 0.0
        %240 = vmatprep.subr.mxu0 0.0
        %v241 = vand.u32 %v204, 4294901760
        %242 = vmatpush1.msra.mxu0 %v241
        %243 = vmatprep.subr.mxu0 0.0
        %244 = vmatpush2.msra.mxu0 0.0
        %245 = vmatprep.subr.mxu0 0.0
        %246 = vmatpush2.msra.mxu0 0.0
        %247 = vmatprep.subr.mxu0 0.0
        %248 = vmatpush2.msra.mxu0 0.0
        %249 = vmatprep.subr.mxu0 0.0
        %250 = vmatpush2.msra.mxu0 0.0
        %251 = vmatprep.subr.mxu0 0.0
        %252 = vmatpush2.msra.mxu0 0.0
        %253 = vmatprep.subr.mxu0 0.0
        %254 = vmatpush2.msra.mxu0 0.0
        %255 = vmatprep.subr.mxu0 0.0
        %256 = vmatpush2.msra.mxu0 0.0
        %257 = vmatprep.subr.mxu0 0.0
        %258 = vmatpush2.msra.mxu0 0.0
        %259 = vmatprep.subr.mxu0 0.0
        %260 = vmatpush2.msra.mxu0 0.0
        %261 = vmatprep.subr.mxu0 0.0
        %262 = vmatpush2.msra.mxu0 0.0
        %263 = vmatprep.subr.mxu0 0.0
        %264 = vmatpush2.msra.mxu0 0.0
        %265 = vmatprep.subr.mxu0 0.0
        %266 = vmatpush2.msra.mxu0 0.0
        %267 = vmatprep.subr.mxu0 0.0
        %268 = vmatpush2.msra.mxu0 0.0
        %269 = vmatprep.subr.mxu0 0.0
        %270 = vmatpush2.msra.mxu0 0.0
        %271 = vmatprep.subr.mxu0 0.0
        %272 = vmatpush2.msra.mxu0 0.0
        %273 = vmatprep.subr.mxu0 0.0
        %274 = vmatpush2.msra.mxu0 0.0
        %275 = vmatprep.mubr.f32.mxu0 0.0
        %v276 = vand.u32 %v208, 4294901760
        %v277 = vsub.f32 %v208, %v276
        %v278 = vand.u32 %v277, 4294901760
        %v279 = vsub.f32 %v277, %v278
        %v280 = vand.u32 %v279, 4294901760
        %281 = vmatmul.mubr.f32.gmra.mxu0 %v280
        %v282 = vpop.f32.mrf.mxu0
        %v283 = vadd.f32 0.0, %v282
        %v284 = vpop.f32.mrf.mxu0
        %285 = vdwg.mxu0
        %286 = vmatprep.subr.mxu0 0.0
        %287 = vmatpush1.msra.mxu0 0.0
        %288 = vmatprep.subr.mxu0 0.0
        %289 = vmatpush1.msra.mxu0 0.0
        %290 = vmatprep.subr.mxu0 0.0
        %291 = vmatpush1.msra.mxu0 0.0
        %292 = vmatprep.subr.mxu0 0.0
        %293 = vmatpush1.msra.mxu0 0.0
        %294 = vmatprep.subr.mxu0 0.0
        %295 = vmatpush1.msra.mxu0 0.0
        %296 = vmatprep.subr.mxu0 0.0
        %297 = vmatpush1.msra.mxu0 0.0
        %298 = vmatprep.subr.mxu0 0.0
        %299 = vmatpush1.msra.mxu0 0.0
        %300 = vmatprep.subr.mxu0 0.0
        %301 = vmatpush1.msra.mxu0 0.0
        %302 = vmatprep.subr.mxu0 0.0
        %303 = vmatpush1.msra.mxu0 0.0
        %304 = vmatprep.subr.mxu0 0.0
        %305 = vmatpush1.msra.mxu0 0.0
        %306 = vmatprep.subr.mxu0 0.0
        %307 = vmatpush1.msra.mxu0 0.0
        %308 = vmatprep.subr.mxu0 0.0
        %309 = vmatpush1.msra.mxu0 0.0
        %310 = vmatprep.subr.mxu0 0.0
        %311 = vmatpush1.msra.mxu0 0.0
        %312 = vmatprep.subr.mxu0 0.0
        %313 = vmatpush1.msra.mxu0 0.0
        %314 = vmatprep.subr.mxu0 0.0
        %315 = vmatpush1.msra.mxu0 0.0
        %316 = vmatprep.subr.mxu0 0.0
        %v317 = vand.u32 %v204, 4294901760
        %v318 = vsub.f32 %v204, %v317
        %v319 = vand.u32 %v318, 4294901760
        %v320 = vsub.f32 %v318, %v319
        %v321 = vand.u32 %v320, 4294901760
        %322 = vmatpush1.msra.mxu0 %v321
        %323 = vmatprep.subr.mxu0 0.0
        %324 = vmatpush2.msra.mxu0 0.0
        %325 = vmatprep.subr.mxu0 0.0
        %326 = vmatpush2.msra.mxu0 0.0
        %327 = vmatprep.subr.mxu0 0.0
        %328 = vmatpush2.msra.mxu0 0.0
        %329 = vmatprep.subr.mxu0 0.0
        %330 = vmatpush2.msra.mxu0 0.0
        %331 = vmatprep.subr.mxu0 0.0
        %332 = vmatpush2.msra.mxu0 0.0
        %333 = vmatprep.subr.mxu0 0.0
        %334 = vmatpush2.msra.mxu0 0.0
        %335 = vmatprep.subr.mxu0 0.0
        %336 = vmatpush2.msra.mxu0 0.0
        %337 = vmatprep.subr.mxu0 0.0
        %338 = vmatpush2.msra.mxu0 0.0
        %339 = vmatprep.subr.mxu0 0.0
        %340 = vmatpush2.msra.mxu0 0.0
        %341 = vmatprep.subr.mxu0 0.0
        %342 = vmatpush2.msra.mxu0 0.0
        %343 = vmatprep.subr.mxu0 0.0
        %344 = vmatpush2.msra.mxu0 0.0
        %345 = vmatprep.subr.mxu0 0.0
        %346 = vmatpush2.msra.mxu0 0.0
        %347 = vmatprep.subr.mxu0 0.0
        %348 = vmatpush2.msra.mxu0 0.0
        %349 = vmatprep.subr.mxu0 0.0
        %350 = vmatpush2.msra.mxu0 0.0
        %351 = vmatprep.subr.mxu0 0.0
        %352 = vmatpush2.msra.mxu0 0.0
        %353 = vmatprep.subr.mxu0 0.0
        %354 = vmatpush2.msra.mxu0 0.0
        %355 = vmatprep.mubr.f32.mxu0 0.0
        %v356 = vand.u32 %v208, 4294901760
        %357 = vmatmul.mubr.f32.gmra.mxu0 %v356
        %v358 = vpop.f32.mrf.mxu0
        %v359 = vadd.f32 %v283, %v358
        %v360 = vpop.f32.mrf.mxu0
        %361 = vdwg.mxu0
        %362 = vmatprep.subr.mxu0 0.0
        %363 = vmatpush1.msra.mxu0 0.0
        %364 = vmatprep.subr.mxu0 0.0
        %365 = vmatpush1.msra.mxu0 0.0
        %366 = vmatprep.subr.mxu0 0.0
        %367 = vmatpush1.msra.mxu0 0.0
        %368 = vmatprep.subr.mxu0 0.0
        %369 = vmatpush1.msra.mxu0 0.0
        %370 = vmatprep.subr.mxu0 0.0
        %371 = vmatpush1.msra.mxu0 0.0
        %372 = vmatprep.subr.mxu0 0.0
        %373 = vmatpush1.msra.mxu0 0.0
        %374 = vmatprep.subr.mxu0 0.0
        %375 = vmatpush1.msra.mxu0 0.0
        %376 = vmatprep.subr.mxu0 0.0
        %377 = vmatpush1.msra.mxu0 0.0
        %378 = vmatprep.subr.mxu0 0.0
        %379 = vmatpush1.msra.mxu0 0.0
        %380 = vmatprep.subr.mxu0 0.0
        %381 = vmatpush1.msra.mxu0 0.0
        %382 = vmatprep.subr.mxu0 0.0
        %383 = vmatpush1.msra.mxu0 0.0
        %384 = vmatprep.subr.mxu0 0.0
        %385 = vmatpush1.msra.mxu0 0.0
        %386 = vmatprep.subr.mxu0 0.0
        %387 = vmatpush1.msra.mxu0 0.0
        %388 = vmatprep.subr.mxu0 0.0
        %389 = vmatpush1.msra.mxu0 0.0
        %390 = vmatprep.subr.mxu0 0.0
        %391 = vmatpush1.msra.mxu0 0.0
        %392 = vmatprep.subr.mxu0 0.0
        %v393 = vand.u32 %v204, 4294901760
        %v394 = vsub.f32 %v204, %v393
        %395 = vmatpush1.msra.mxu0 %v394
        %396 = vmatprep.subr.mxu0 0.0
        %397 = vmatpush2.msra.mxu0 0.0
        %398 = vmatprep.subr.mxu0 0.0
        %399 = vmatpush2.msra.mxu0 0.0
        %400 = vmatprep.subr.mxu0 0.0
        %401 = vmatpush2.msra.mxu0 0.0
        %402 = vmatprep.subr.mxu0 0.0
        %403 = vmatpush2.msra.mxu0 0.0
        %404 = vmatprep.subr.mxu0 0.0
        %405 = vmatpush2.msra.mxu0 0.0
        %406 = vmatprep.subr.mxu0 0.0
        %407 = vmatpush2.msra.mxu0 0.0
        %408 = vmatprep.subr.mxu0 0.0
        %409 = vmatpush2.msra.mxu0 0.0
        %410 = vmatprep.subr.mxu0 0.0
        %411 = vmatpush2.msra.mxu0 0.0
        %412 = vmatprep.subr.mxu0 0.0
        %413 = vmatpush2.msra.mxu0 0.0
        %414 = vmatprep.subr.mxu0 0.0
        %415 = vmatpush2.msra.mxu0 0.0
        %416 = vmatprep.subr.mxu0 0.0
        %417 = vmatpush2.msra.mxu0 0.0
        %418 = vmatprep.subr.mxu0 0.0
        %419 = vmatpush2.msra.mxu0 0.0
        %420 = vmatprep.subr.mxu0 0.0
        %421 = vmatpush2.msra.mxu0 0.0
        %422 = vmatprep.subr.mxu0 0.0
        %423 = vmatpush2.msra.mxu0 0.0
        %424 = vmatprep.subr.mxu0 0.0
        %425 = vmatpush2.msra.mxu0 0.0
        %426 = vmatprep.subr.mxu0 0.0
        %427 = vmatpush2.msra.mxu0 0.0
        %428 = vmatprep.mubr.f32.mxu0 0.0
        %v429 = vand.u32 %v208, 4294901760
        %v430 = vsub.f32 %v208, %v429
        %431 = vmatmul.mubr.f32.gmra.mxu0 %v430
        %v432 = vpop.f32.mrf.mxu0
        %v433 = vadd.f32 %v359, %v432
        %v434 = vpop.f32.mrf.mxu0
        %435 = vdwg.mxu0
        %436 = vmatprep.subr.mxu0 0.0
        %437 = vmatpush1.msra.mxu0 0.0
        %438 = vmatprep.subr.mxu0 0.0
        %439 = vmatpush1.msra.mxu0 0.0
        %440 = vmatprep.subr.mxu0 0.0
        %441 = vmatpush1.msra.mxu0 0.0
        %442 = vmatprep.subr.mxu0 0.0
        %443 = vmatpush1.msra.mxu0 0.0
        %444 = vmatprep.subr.mxu0 0.0
        %445 = vmatpush1.msra.mxu0 0.0
        %446 = vmatprep.subr.mxu0 0.0
        %447 = vmatpush1.msra.mxu0 0.0
        %448 = vmatprep.subr.mxu0 0.0
        %449 = vmatpush1.msra.mxu0 0.0
        %450 = vmatprep.subr.mxu0 0.0
        %451 = vmatpush1.msra.mxu0 0.0
        %452 = vmatprep.subr.mxu0 0.0
        %453 = vmatpush1.msra.mxu0 0.0
        %454 = vmatprep.subr.mxu0 0.0
        %455 = vmatpush1.msra.mxu0 0.0
        %456 = vmatprep.subr.mxu0 0.0
        %457 = vmatpush1.msra.mxu0 0.0
        %458 = vmatprep.subr.mxu0 0.0
        %459 = vmatpush1.msra.mxu0 0.0
        %460 = vmatprep.subr.mxu0 0.0
        %461 = vmatpush1.msra.mxu0 0.0
        %462 = vmatprep.subr.mxu0 0.0
        %463 = vmatpush1.msra.mxu0 0.0
        %464 = vmatprep.subr.mxu0 0.0
        %465 = vmatpush1.msra.mxu0 0.0
        %466 = vmatprep.subr.mxu0 0.0
        %v467 = vand.u32 %v204, 4294901760
        %468 = vmatpush1.msra.mxu0 %v467
        %469 = vmatprep.subr.mxu0 0.0
        %470 = vmatpush2.msra.mxu0 0.0
        %471 = vmatprep.subr.mxu0 0.0
        %472 = vmatpush2.msra.mxu0 0.0
        %473 = vmatprep.subr.mxu0 0.0
        %474 = vmatpush2.msra.mxu0 0.0
        %475 = vmatprep.subr.mxu0 0.0
        %476 = vmatpush2.msra.mxu0 0.0
        %477 = vmatprep.subr.mxu0 0.0
        %478 = vmatpush2.msra.mxu0 0.0
        %479 = vmatprep.subr.mxu0 0.0
        %480 = vmatpush2.msra.mxu0 0.0
        %481 = vmatprep.subr.mxu0 0.0
        %482 = vmatpush2.msra.mxu0 0.0
        %483 = vmatprep.subr.mxu0 0.0
        %484 = vmatpush2.msra.mxu0 0.0
        %485 = vmatprep.subr.mxu0 0.0
        %486 = vmatpush2.msra.mxu0 0.0
        %487 = vmatprep.subr.mxu0 0.0
        %488 = vmatpush2.msra.mxu0 0.0
        %489 = vmatprep.subr.mxu0 0.0
        %490 = vmatpush2.msra.mxu0 0.0
        %491 = vmatprep.subr.mxu0 0.0
        %492 = vmatpush2.msra.mxu0 0.0
        %493 = vmatprep.subr.mxu0 0.0
        %494 = vmatpush2.msra.mxu0 0.0
        %495 = vmatprep.subr.mxu0 0.0
        %496 = vmatpush2.msra.mxu0 0.0
        %497 = vmatprep.subr.mxu0 0.0
        %498 = vmatpush2.msra.mxu0 0.0
        %499 = vmatprep.subr.mxu0 0.0
        %500 = vmatpush2.msra.mxu0 0.0
        %501 = vmatprep.mubr.f32.mxu0 0.0
        %v502 = vand.u32 %v208, 4294901760
        %v503 = vsub.f32 %v208, %v502
        %v504 = vand.u32 %v503, 4294901760
        %505 = vmatmul.mubr.f32.gmra.mxu0 %v504
        %v506 = vpop.f32.mrf.mxu0
        %v507 = vadd.f32 %v433, %v506
        %v508 = vpop.f32.mrf.mxu0
        %509 = vdwg.mxu0
        %510 = vmatprep.subr.mxu0 0.0
        %511 = vmatpush1.msra.mxu0 0.0
        %512 = vmatprep.subr.mxu0 0.0
        %513 = vmatpush1.msra.mxu0 0.0
        %514 = vmatprep.subr.mxu0 0.0
        %515 = vmatpush1.msra.mxu0 0.0
        %516 = vmatprep.subr.mxu0 0.0
        %517 = vmatpush1.msra.mxu0 0.0
        %518 = vmatprep.subr.mxu0 0.0
        %519 = vmatpush1.msra.mxu0 0.0
        %520 = vmatprep.subr.mxu0 0.0
        %521 = vmatpush1.msra.mxu0 0.0
        %522 = vmatprep.subr.mxu0 0.0
        %523 = vmatpush1.msra.mxu0 0.0
        %524 = vmatprep.subr.mxu0 0.0
        %525 = vmatpush1.msra.mxu0 0.0
        %526 = vmatprep.subr.mxu0 0.0
        %527 = vmatpush1.msra.mxu0 0.0
        %528 = vmatprep.subr.mxu0 0.0
        %529 = vmatpush1.msra.mxu0 0.0
        %530 = vmatprep.subr.mxu0 0.0
        %531 = vmatpush1.msra.mxu0 0.0
        %532 = vmatprep.subr.mxu0 0.0
        %533 = vmatpush1.msra.mxu0 0.0
        %534 = vmatprep.subr.mxu0 0.0
        %535 = vmatpush1.msra.mxu0 0.0
        %536 = vmatprep.subr.mxu0 0.0
        %537 = vmatpush1.msra.mxu0 0.0
        %538 = vmatprep.subr.mxu0 0.0
        %539 = vmatpush1.msra.mxu0 0.0
        %540 = vmatprep.subr.mxu0 0.0
        %v541 = vand.u32 %v204, 4294901760
        %v542 = vsub.f32 %v204, %v541
        %v543 = vand.u32 %v542, 4294901760
        %544 = vmatpush1.msra.mxu0 %v543
        %545 = vmatprep.subr.mxu0 0.0
        %546 = vmatpush2.msra.mxu0 0.0
        %547 = vmatprep.subr.mxu0 0.0
        %548 = vmatpush2.msra.mxu0 0.0
        %549 = vmatprep.subr.mxu0 0.0
        %550 = vmatpush2.msra.mxu0 0.0
        %551 = vmatprep.subr.mxu0 0.0
        %552 = vmatpush2.msra.mxu0 0.0
        %553 = vmatprep.subr.mxu0 0.0
        %554 = vmatpush2.msra.mxu0 0.0
        %555 = vmatprep.subr.mxu0 0.0
        %556 = vmatpush2.msra.mxu0 0.0
        %557 = vmatprep.subr.mxu0 0.0
        %558 = vmatpush2.msra.mxu0 0.0
        %559 = vmatprep.subr.mxu0 0.0
        %560 = vmatpush2.msra.mxu0 0.0
        %561 = vmatprep.subr.mxu0 0.0
        %562 = vmatpush2.msra.mxu0 0.0
        %563 = vmatprep.subr.mxu0 0.0
        %564 = vmatpush2.msra.mxu0 0.0
        %565 = vmatprep.subr.mxu0 0.0
        %566 = vmatpush2.msra.mxu0 0.0
        %567 = vmatprep.subr.mxu0 0.0
        %568 = vmatpush2.msra.mxu0 0.0
        %569 = vmatprep.subr.mxu0 0.0
        %570 = vmatpush2.msra.mxu0 0.0
        %571 = vmatprep.subr.mxu0 0.0
        %572 = vmatpush2.msra.mxu0 0.0
        %573 = vmatprep.subr.mxu0 0.0
        %574 = vmatpush2.msra.mxu0 0.0
        %575 = vmatprep.subr.mxu0 0.0
        %576 = vmatpush2.msra.mxu0 0.0
        %577 = vmatprep.mubr.f32.mxu0 0.0
        %v578 = vand.u32 %v208, 4294901760
        %579 = vmatmul.mubr.f32.gmra.mxu0 %v578
        %v580 = vpop.f32.mrf.mxu0
        %v581 = vadd.f32 %v507, %v580
        %v582 = vpop.f32.mrf.mxu0
        %583 = vdwg.mxu0
        %584 = vmatprep.subr.mxu0 0.0
        %585 = vmatpush1.msra.mxu0 0.0
        %586 = vmatprep.subr.mxu0 0.0
        %587 = vmatpush1.msra.mxu0 0.0
        %588 = vmatprep.subr.mxu0 0.0
        %589 = vmatpush1.msra.mxu0 0.0
        %590 = vmatprep.subr.mxu0 0.0
        %591 = vmatpush1.msra.mxu0 0.0
        %592 = vmatprep.subr.mxu0 0.0
        %593 = vmatpush1.msra.mxu0 0.0
        %594 = vmatprep.subr.mxu0 0.0
        %595 = vmatpush1.msra.mxu0 0.0
        %596 = vmatprep.subr.mxu0 0.0
        %597 = vmatpush1.msra.mxu0 0.0
        %598 = vmatprep.subr.mxu0 0.0
        %599 = vmatpush1.msra.mxu0 0.0
        %600 = vmatprep.subr.mxu0 0.0
        %601 = vmatpush1.msra.mxu0 0.0
        %602 = vmatprep.subr.mxu0 0.0
        %603 = vmatpush1.msra.mxu0 0.0
        %604 = vmatprep.subr.mxu0 0.0
        %605 = vmatpush1.msra.mxu0 0.0
        %606 = vmatprep.subr.mxu0 0.0
        %607 = vmatpush1.msra.mxu0 0.0
        %608 = vmatprep.subr.mxu0 0.0
        %609 = vmatpush1.msra.mxu0 0.0
        %610 = vmatprep.subr.mxu0 0.0
        %611 = vmatpush1.msra.mxu0 0.0
        %612 = vmatprep.subr.mxu0 0.0
        %613 = vmatpush1.msra.mxu0 0.0
        %614 = vmatprep.subr.mxu0 0.0
        %v615 = vand.u32 %v204, 4294901760
        %616 = vmatpush1.msra.mxu0 %v615
        %617 = vmatprep.subr.mxu0 0.0
        %618 = vmatpush2.msra.mxu0 0.0
        %619 = vmatprep.subr.mxu0 0.0
        %620 = vmatpush2.msra.mxu0 0.0
        %621 = vmatprep.subr.mxu0 0.0
        %622 = vmatpush2.msra.mxu0 0.0
        %623 = vmatprep.subr.mxu0 0.0
        %624 = vmatpush2.msra.mxu0 0.0
        %625 = vmatprep.subr.mxu0 0.0
        %626 = vmatpush2.msra.mxu0 0.0
        %627 = vmatprep.subr.mxu0 0.0
        %628 = vmatpush2.msra.mxu0 0.0
        %629 = vmatprep.subr.mxu0 0.0
        %630 = vmatpush2.msra.mxu0 0.0
        %631 = vmatprep.subr.mxu0 0.0
        %632 = vmatpush2.msra.mxu0 0.0
        %633 = vmatprep.subr.mxu0 0.0
        %634 = vmatpush2.msra.mxu0 0.0
        %635 = vmatprep.subr.mxu0 0.0
        %636 = vmatpush2.msra.mxu0 0.0
        %637 = vmatprep.subr.mxu0 0.0
        %638 = vmatpush2.msra.mxu0 0.0
        %639 = vmatprep.subr.mxu0 0.0
        %640 = vmatpush2.msra.mxu0 0.0
        %641 = vmatprep.subr.mxu0 0.0
        %642 = vmatpush2.msra.mxu0 0.0
        %643 = vmatprep.subr.mxu0 0.0
        %644 = vmatpush2.msra.mxu0 0.0
        %645 = vmatprep.subr.mxu0 0.0
        %646 = vmatpush2.msra.mxu0 0.0
        %647 = vmatprep.subr.mxu0 0.0
        %648 = vmatpush2.msra.mxu0 0.0
        %649 = vmatprep.mubr.f32.mxu0 0.0
        %v650 = vand.u32 %v208, 4294901760
        %651 = vmatmul.mubr.f32.gmra.mxu0 %v650
        %v652 = vpop.f32.mrf.mxu0
        %v653 = vadd.f32 %v581, %v652
        %v654 = vpop.f32.mrf.mxu0
        %655 = vdwg.mxu0
        %v656 = vsub.f32 %v183, %v195
        %v657 = vmul.f32 %v656, 1.442695
        %v658 = vpow.pop %v657
        %v659 = vmul.f32 %v184, %v658
        %v661 = vlaneseq
        %v662 = vshrl.u32 %v661, 7
        %v663 = vsub.s32 0, %v662
        %v664 = vrot.slane %v659, %v663
        %v666 = vadd.f32 %v653, %v664
        %v667 = vlog2.pop %v666
        %v668 = vmul.f32 %v667, 0.6931472
        %v669 = vadd.f32 %v200, %v668
        %v670 = vmul.f32 %v669, 0.2
        %v671 = vsel %vm182, 1, 0
        %vm672 = vcmp.eq.s32.totalorder %v671, 1
        %v673 = vsel %vm672, %v670, %v185
        %674 = vst.msk [vmem:[%s160] sm:$0xff] %vm187, %v673
        %v676 = vcombine.high %v653, %v653
        %v678 = vunpack.c.l.s4 1966171168
        %v679 = vunpack.c.0.s8 %v678
        %v680 = vlaneseq
        %v681 = vshrl.u32 %v680, 7
        %v682 = vsub.s32 %v679, %v681
        %v683 = vrot.slane %v676, %v682
        %v684 = vcombine.high %v683, %v683
        %v686 = vunpack.c.l.s4 1966171168
        %v687 = vunpack.c.0.s8 %v686
        %v688 = vlaneseq
        %v689 = vshrl.u32 %v688, 7
        %v690 = vsub.s32 %v687, %v689
        %v691 = vrot.slane %v684, %v690
        %v692 = vcombine.high %v691, %v691
        %v694 = vadd.f32 %v659, %v692
        %vm695 = vcmask 253952
        %696 = vst.msk [vmem:[#allocation3] sm:$0x1] %vm695, %v195
        %697 = vst.msk [vmem:[#allocation4] sm:$0x1] %vm695, %v694
        %s698 = sand.u32 %s79, 1
        %s699 = scalar_lea.sflag [#allocation7], %s698
        %s700 = sand.u32 %s79, 1
        %s701 = smul.addr %s700, 8
        %s702 = scalar_lea.vmem [#allocation8], %s701
        // Predicated region
        $region33: #{soft_prefix_max.1} parent=23 // pred_check
          %p703 = pneg %p89
        $region34: #{soft_prefix_max.1} parent=23 // pred_check_branch
          %705 = sbr.rel (%p703) target = $region36
        $region35: #{soft_prefix_max.1} parent=23 // pred_region
          %s707 = ssub.s32 128, 128
          %708 = vsyncadd %s699, %s707
          %s709 = sadd.s32 %s24, %s25
          %s710 = sadd.s32 %s709, %s23
          %s711 = smul.addr %s710, 128
          %s712 = scalar_lea.hbm %s1, %s711
          %s714 = sshll.u32 %s702, 4
          %s715 = int_to_ptr.vmem [resolvable:$true] %s714
          %717 = dma.vmem_to_hbm [thread:$0]  %s715, 128, %s712, %s699
        $region36: #{soft_prefix_max.1} parent=23 // pred_fallthru
          _
      $region24: #{soft_prefix_max.1} parent=5 // pred_fallthru
        _
      %p718 = scmp.le.s32.totalorder 2, %s13
      // Predicated region
      $region37: #{soft_prefix_max.1} parent=5 // pred_check
        %p719 = pneg %p718
      $region38: #{soft_prefix_max.1} parent=5 // pred_check_branch
        %721 = sbr.rel (%p719) target = $region40
      $region39: #{soft_prefix_max.1} parent=5 // pred_region
        %s722 = ssub.s32 %s13, 2
        // Predicated region
        $region41: #{soft_prefix_max.1} parent=39 // pred_check
          %p723 = pneg %p95
        $region42: #{soft_prefix_max.1} parent=39 // pred_check_branch
          %725 = sbr.rel (%p723) target = $region44
        $region43: #{soft_prefix_max.1} parent=39 // pred_region
          %s726 = sand.u32 %s80, 1
          %s727 = scalar_lea.sflag [#allocation7], %s726
          %s728 = sand.u32 %s80, 1
          %s729 = smul.addr %s728, 8
          %s730 = scalar_lea.vmem [#allocation8], %s729
          %731 = dma.done %s727, 128
        $region44: #{soft_prefix_max.1} parent=39 // pred_fallthru
          _
      $region40: #{soft_prefix_max.1} parent=5 // pred_fallthru
        _
    $region6: #{soft_prefix_max.1} parent=1 // loop_footer
      %s17 = sadd.s32 1, %s13
    $region7: #{soft_prefix_max.1} parent=1 // loop_footer_branch
      %12 = sbr.rel target = $region3
    $region8: #{soft_prefix_max.1} parent=1 // loop_exit
      _
    %732 = vsyncpa [#allocation6], 1
    %s733 = scalar_lea.sflag [#allocation6], 1
    %734 = vsyncpa %s733, 1
    %735 = vsyncpa [#allocation7], 1
    %s736 = scalar_lea.sflag [#allocation7], 1
    %737 = vsyncpa %s736, 1

</llo_original>
